<compile_context>
chip_gen: v6e
topology: v6e:2x2x1
jax: 0.10.0
libtpu: 0.0.40
codegen_flags: <defaults>
</compile_context>

<pallas_src>
import functools

import jax
import jax.numpy as jnp
import numpy as np
from jax.experimental import pallas as pl
from jax.experimental.pallas import tpu as pltpu


def _round_up(v, m):
    return (v + m - 1) // m * m


def _preproc_kernel(x_ref, o_ref, buf_ref, *, L, Lp, PADL, PADR,
                    ma_k, ma_pad, mv_k, mv_pad, eps):
    C = x_ref.shape[0]                                       # channel tile (multiple of 8)
    x = x_ref[...]                                           # (C, Lp) f32; lanes >= L are 0

    # ---- 1) global standardization (torch.std is unbiased => divide by L-1). ----
    # Fused reductions: sum and sum-of-squares in one pass (padded lanes contribute 0).
    ssum = jnp.sum(x, axis=-1, keepdims=True)
    ssq = jnp.sum(x * x, axis=-1, keepdims=True)
    mean = ssum * (1.0 / L)
    var = jnp.maximum((ssq - mean * ssum) * (1.0 / (L - 1)), 0.0)
    y = (x - mean) * (1.0 / (jnp.sqrt(var) + eps))

    if Lp != L:                                              # re-zero padded tail lanes
        lane = jax.lax.broadcasted_iota(jnp.int32, (C, Lp), 1)
        valid = lane < L
        y = jnp.where(valid, y, 0.0)

    # Left pad of the scratch row stays zero: it supplies the zero fill for every shifted
    # read below (doubling-scan shifts and the window lower edges).
    buf_ref[:, :PADL] = jnp.zeros((C, PADL), jnp.float32)

    def cumsum_into_buf(v):
        """Inclusive prefix sum along lanes (Hillis-Steele doubling).  The final cumsum is
        left resident in buf_ref[:, PADL:PADL+Lp]; moving_avg below does not re-store it."""
        cur = v
        s = 1
        while s < Lp:
            buf_ref[:, PADL:PADL + Lp] = cur
            cur = cur + buf_ref[:, PADL - s:PADL - s + Lp]   # shift-right by s, zero fill
            s *= 2
        buf_ref[:, PADL:PADL + Lp] = cur
        # TODO(synk): for very long records a two-level (intra-128-lane + cross-block) scan
        # would cut scratch traffic / precision loss further; kept single-level for safety.

    def moving_avg_from_buf(k, pad):
        """avg_pool1d(stride=1, zero pad, count_include_pad=True) from the cumsum in buf."""
        R = k - 1 - pad                                      # upper window offset
        total = buf_ref[:, PADL + Lp - 1:PADL + Lp]          # == C[L-1] (cumsum flat >= L)
        buf_ref[:, PADL + Lp:PADL + Lp + PADR] = jnp.broadcast_to(total, (C, PADR))
        hi = buf_ref[:, PADL + R:PADL + R + Lp]              # C[min(i+R, L-1)]
        lo = buf_ref[:, PADL - (pad + 1):PADL - (pad + 1) + Lp]  # C[i-pad-1], 0 for i<pad+1
        return (hi - lo) * (1.0 / k)

    # ---- 2) baseline-wander removal: y - moving_average(y). ----
    cumsum_into_buf(y)
    z = y - moving_avg_from_buf(ma_k, ma_pad)
    if Lp != L:
        z = jnp.where(valid, z, 0.0)                         # keep zero-pad semantics

    # ---- 3) moving-RMS normalization. ----
    cumsum_into_buf(z * z)
    mv = moving_avg_from_buf(mv_k, mv_pad)
    d = jnp.sqrt(mv) + eps
    inv = pl.reciprocal(d, approx=True)                      # EUP slot, off the VALU path
    inv = inv * (2.0 - d * inv)                              # one Newton step -> f32-accurate
    o_ref[...] = z * inv


def preprocess(x, ma_win=2, mv_win=4, num_samples_per_second=125, eps=1e-5):
    """Pallas equivalent of Preprocessor(ma_win, mv_win, fs).forward(x).

    Accepts a 1-D signal (module semantics) or a (C, L) batch of signals, each row
    standardized / filtered independently in a single kernel launch."""
    squeeze = (x.ndim == 1)
    x2 = x[None, :] if squeeze else x
    C, L = x2.shape
    assert L >= 2, "unbiased std divides by L-1; need at least 2 samples"

    ma_kernel = ma_win * num_samples_per_second + 1          # first avg_pool kernel size
    mv_kernel = mv_win * num_samples_per_second + 2
    ma_k, ma_pad = ma_kernel, (ma_kernel - 1) // 2
    mv_k, mv_pad = mv_kernel - 1, (mv_kernel - 1) // 2       # second avg_pool kernel / pad

    # Lane padding: all block / scratch stores are lane-dense (multiple of 128).
    Lp = _round_up(L, 128)

    # Channel padding / tiling: sublane dim a multiple of 8; per-step blocks stay large
    # enough for HBM efficiency (v5e) while capping VMEM per tile (v7x).
    c_tile = _round_up(C, 8) if C <= 32 else 32
    Cp = _round_up(C, c_tile)

    # Scratch row padding: left pad covers the largest scan shift and the window lower-edge
    # offset (pad+1); right pad only needs the largest upper window offset (clamp region).
    max_shift = 1
    while max_shift * 2 < Lp:
        max_shift *= 2
    PADL = _round_up(max(max_shift, ma_pad + 1, mv_pad + 1), 128)
    PADR = _round_up(max(ma_k - 1 - ma_pad, mv_k - 1 - mv_pad), 128)
    scratch_w = PADL + Lp + PADR

    xp = jnp.pad(x2.astype(jnp.float32), ((0, Cp - C), (0, Lp - L)))

    kern = functools.partial(
        _preproc_kernel, L=L, Lp=Lp, PADL=PADL, PADR=PADR,
        ma_k=ma_k, ma_pad=ma_pad, mv_k=mv_k, mv_pad=mv_pad, eps=float(eps))

    # Explicit VMEM budget: double-buffered in + out blocks plus the scratch row, w/ slack.
    block_bytes = c_tile * Lp * 4
    vmem_bytes = 4 * block_bytes + c_tile * scratch_w * 4 + (4 << 20)
    vmem_bytes = int(min(max(vmem_bytes, 16 << 20), 48 << 20))

    out = pl.pallas_call(
        kern,
        out_shape=jax.ShapeDtypeStruct((Cp, Lp), jnp.float32),
        grid=(Cp // c_tile,),
        in_specs=[pl.BlockSpec((c_tile, Lp), lambda i: (i, 0))],
        out_specs=pl.BlockSpec((c_tile, Lp), lambda i: (i, 0)),
        scratch_shapes=[pltpu.VMEM((c_tile, scratch_w), jnp.float32)],
        compiler_params=pltpu.CompilerParams(
            dimension_semantics=("parallel",),                # channel tiles shard over TCs
            vmem_limit_bytes=vmem_bytes),
    )(xp)

    out = out[:C, :L]
    return out[0] if squeeze else out


def _reference_np(x, ma_win=2, mv_win=4, num_samples_per_second=125, eps=1e-5):
    """float64 NumPy reference mirroring the PyTorch forward pass (direct convolutions)."""
    x = np.asarray(x, np.float64)
    L = x.shape[0]
    ma_k = ma_win * num_samples_per_second + 1
    mv_kernel = mv_win * num_samples_per_second + 2
    ma_pad = (ma_k - 1) // 2
    mv_k = mv_kernel - 1
    mv_pad = (mv_kernel - 1) // 2
    mean = x.mean()
    std = np.sqrt(np.sum((x - mean) ** 2) / (L - 1))          # unbiased, like torch.std
    y = (x - mean) / (std + eps)
    ma = np.convolve(np.pad(y, (ma_pad, ma_pad)), np.ones(ma_k), mode="valid") / ma_k
    z = y - ma
    mv = np.convolve(np.pad(z * z, (mv_pad, mv_pad)), np.ones(mv_k), mode="valid") / mv_k
    return z / (np.sqrt(mv) + eps)


if __name__ == "__main__":
    key = jax.random.PRNGKey(0)
    k1, k2 = jax.random.split(key)

    # (a) batched case: 8 leads stacked into the sublane dimension, lane-aligned length.
    xb = jax.random.normal(k1, (8, 512), dtype=jnp.float32)
    outb = jax.block_until_ready(preprocess(xb))
    assert outb.shape == (8, 512) and outb.dtype == jnp.float32
    refb = np.stack([_reference_np(np.asarray(xb[c])) for c in range(xb.shape[0])])
    assert np.allclose(np.asarray(outb), refb, rtol=2e-3, atol=2e-3), "batched mismatch"

    # (b) module case: single 1-D signal with a non-multiple-of-128 length, exercising the
    #     lane-padding / masking path and channel padding to 8 sublanes.
    x1 = jax.random.normal(k2, (500,), dtype=jnp.float32)
    out1 = jax.block_until_ready(preprocess(x1))
    assert out1.shape == (500,) and out1.dtype == jnp.float32
    ref1 = _reference_np(np.asarray(x1))
    assert np.allclose(np.asarray(out1), ref1, rtol=2e-3, atol=2e-3), "1-D mismatch"

    print("KERNEL_OK")
</pallas_src>

<mosaic_0001>
module attributes {stable_mosaic.version = 11 : i64} {
  func.func @_preproc_kernel(%arg0: i32, %arg1: memref<8x512xf32, #tpu.memory_space<vmem>>, %arg2: memref<8x512xf32, #tpu.memory_space<vmem>>, %arg3: memref<8x1024xf32, #tpu.memory_space<vmem>>) attributes {dimension_semantics = [#tpu.dimension_semantics<parallel>], iteration_bounds = array<i64: 1>, scalar_prefetch = 0 : i64, scratch_operands = 1 : i64, tpu.core_type = #tpu.core_type<tc>, window_params = [{transform_indices = @transform_0, window_bounds = array<i64: 8, 512>}, {transform_indices = @transform_1, window_bounds = array<i64: 8, 512>}]} {
    %c0 = arith.constant 0 : index
    %c0_0 = arith.constant 0 : index
    %0 = vector.load %arg1[%c0, %c0_0] : memref<8x512xf32, #tpu.memory_space<vmem>>, vector<8x512xf32>
    %cst = arith.constant dense<0.000000e+00> : vector<8xf32>
    %1 = vector.multi_reduction <add>, %0, %cst [1] : vector<8x512xf32> to vector<8xf32>
    %2 = vector.shape_cast %1 : vector<8xf32> to vector<8x1xf32>
    %3 = arith.mulf %0, %0 : vector<8x512xf32>
    %cst_1 = arith.constant dense<0.000000e+00> : vector<8xf32>
    %4 = vector.multi_reduction <add>, %3, %cst_1 [1] : vector<8x512xf32> to vector<8xf32>
    %5 = vector.shape_cast %4 : vector<8xf32> to vector<8x1xf32>
    %cst_2 = arith.constant 0.001953125 : f32
    %6 = vector.broadcast %cst_2 : f32 to vector<8x1xf32>
    %7 = arith.mulf %2, %6 : vector<8x1xf32>
    %8 = arith.mulf %7, %2 : vector<8x1xf32>
    %9 = arith.subf %5, %8 : vector<8x1xf32>
    %cst_3 = arith.constant 0.00195694715 : f32
    %10 = vector.broadcast %cst_3 : f32 to vector<8x1xf32>
    %11 = arith.mulf %9, %10 : vector<8x1xf32>
    %cst_4 = arith.constant 0.000000e+00 : f32
    %12 = vector.broadcast %cst_4 : f32 to vector<8x1xf32>
    %13 = arith.maximumf %11, %12 : vector<8x1xf32>
    %14 = vector.broadcast %7 : vector<8x1xf32> to vector<8x512xf32>
    %15 = arith.subf %0, %14 : vector<8x512xf32>
    %16 = math.sqrt %13 : vector<8x1xf32>
    %cst_5 = arith.constant 9.99999974E-6 : f32
    %17 = vector.broadcast %cst_5 : f32 to vector<8x1xf32>
    %18 = arith.addf %16, %17 : vector<8x1xf32>
    %cst_6 = arith.constant 1.000000e+00 : f32
    %19 = vector.broadcast %cst_6 : f32 to vector<8x1xf32>
    %20 = arith.divf %19, %18 : vector<8x1xf32>
    %21 = vector.broadcast %20 : vector<8x1xf32> to vector<8x512xf32>
    %22 = arith.mulf %15, %21 : vector<8x512xf32>
    %cst_7 = arith.constant 0.000000e+00 : f32
    %23 = vector.broadcast %cst_7 : f32 to vector<8x256xf32>
    %c0_8 = arith.constant 0 : index
    %c0_9 = arith.constant 0 : index
    %24 = vector.load %arg3[%c0_8, %c0_9] : memref<8x1024xf32, #tpu.memory_space<vmem>>, vector<8x256xf32>
    tpu.vector_store %arg3[%c0_8, %c0_9], %23 {strides = array<i32>} : memref<8x1024xf32, #tpu.memory_space<vmem>>, vector<8x256xf32>,
    %c0_10 = arith.constant 0 : index
    %c256 = arith.constant 256 : index
    %25 = vector.load %arg3[%c0_10, %c256] : memref<8x1024xf32, #tpu.memory_space<vmem>>, vector<8x512xf32>
    tpu.vector_store %arg3[%c0_10, %c256], %22 {strides = array<i32>} : memref<8x1024xf32, #tpu.memory_space<vmem>>, vector<8x512xf32>,
    %c0_11 = arith.constant 0 : index
    %c255 = arith.constant 255 : index
    %26 = vector.load %arg3[%c0_11, %c255] : memref<8x1024xf32, #tpu.memory_space<vmem>>, vector<8x512xf32>
    %27 = arith.addf %22, %26 : vector<8x512xf32>
    %c0_12 = arith.constant 0 : index
    %c256_13 = arith.constant 256 : index
    %28 = vector.load %arg3[%c0_12, %c256_13] : memref<8x1024xf32, #tpu.memory_space<vmem>>, vector<8x512xf32>
    tpu.vector_store %arg3[%c0_12, %c256_13], %27 {strides = array<i32>} : memref<8x1024xf32, #tpu.memory_space<vmem>>, vector<8x512xf32>,
    %c0_14 = arith.constant 0 : index
    %c254 = arith.constant 254 : index
    %29 = vector.load %arg3[%c0_14, %c254] : memref<8x1024xf32, #tpu.memory_space<vmem>>, vector<8x512xf32>
    %30 = arith.addf %27, %29 : vector<8x512xf32>
    %c0_15 = arith.constant 0 : index
    %c256_16 = arith.constant 256 : index
    %31 = vector.load %arg3[%c0_15, %c256_16] : memref<8x1024xf32, #tpu.memory_space<vmem>>, vector<8x512xf32>
    tpu.vector_store %arg3[%c0_15, %c256_16], %30 {strides = array<i32>} : memref<8x1024xf32, #tpu.memory_space<vmem>>, vector<8x512xf32>,
    %c0_17 = arith.constant 0 : index
    %c252 = arith.constant 252 : index
    %32 = vector.load %arg3[%c0_17, %c252] : memref<8x1024xf32, #tpu.memory_space<vmem>>, vector<8x512xf32>
    %33 = arith.addf %30, %32 : vector<8x512xf32>
    %c0_18 = arith.constant 0 : index
    %c256_19 = arith.constant 256 : index
    %34 = vector.load %arg3[%c0_18, %c256_19] : memref<8x1024xf32, #tpu.memory_space<vmem>>, vector<8x512xf32>
    tpu.vector_store %arg3[%c0_18, %c256_19], %33 {strides = array<i32>} : memref<8x1024xf32, #tpu.memory_space<vmem>>, vector<8x512xf32>,
    %c0_20 = arith.constant 0 : index
    %c248 = arith.constant 248 : index
    %35 = vector.load %arg3[%c0_20, %c248] : memref<8x1024xf32, #tpu.memory_space<vmem>>, vector<8x512xf32>
    %36 = arith.addf %33, %35 : vector<8x512xf32>
    %c0_21 = arith.constant 0 : index
    %c256_22 = arith.constant 256 : index
    %37 = vector.load %arg3[%c0_21, %c256_22] : memref<8x1024xf32, #tpu.memory_space<vmem>>, vector<8x512xf32>
    tpu.vector_store %arg3[%c0_21, %c256_22], %36 {strides = array<i32>} : memref<8x1024xf32, #tpu.memory_space<vmem>>, vector<8x512xf32>,
    %c0_23 = arith.constant 0 : index
    %c240 = arith.constant 240 : index
    %38 = vector.load %arg3[%c0_23, %c240] : memref<8x1024xf32, #tpu.memory_space<vmem>>, vector<8x512xf32>
    %39 = arith.addf %36, %38 : vector<8x512xf32>
    %c0_24 = arith.constant 0 : index
    %c256_25 = arith.constant 256 : index
    %40 = vector.load %arg3[%c0_24, %c256_25] : memref<8x1024xf32, #tpu.memory_space<vmem>>, vector<8x512xf32>
    tpu.vector_store %arg3[%c0_24, %c256_25], %39 {strides = array<i32>} : memref<8x1024xf32, #tpu.memory_space<vmem>>, vector<8x512xf32>,
    %c0_26 = arith.constant 0 : index
    %c224 = arith.constant 224 : index
    %41 = vector.load %arg3[%c0_26, %c224] : memref<8x1024xf32, #tpu.memory_space<vmem>>, vector<8x512xf32>
    %42 = arith.addf %39, %41 : vector<8x512xf32>
    %c0_27 = arith.constant 0 : index
    %c256_28 = arith.constant 256 : index
    %43 = vector.load %arg3[%c0_27, %c256_28] : memref<8x1024xf32, #tpu.memory_space<vmem>>, vector<8x512xf32>
    tpu.vector_store %arg3[%c0_27, %c256_28], %42 {strides = array<i32>} : memref<8x1024xf32, #tpu.memory_space<vmem>>, vector<8x512xf32>,
    %c0_29 = arith.constant 0 : index
    %c192 = arith.constant 192 : index
    %44 = vector.load %arg3[%c0_29, %c192] : memref<8x1024xf32, #tpu.memory_space<vmem>>, vector<8x512xf32>
    %45 = arith.addf %42, %44 : vector<8x512xf32>
    %c0_30 = arith.constant 0 : index
    %c256_31 = arith.constant 256 : index
    %46 = vector.load %arg3[%c0_30, %c256_31] : memref<8x1024xf32, #tpu.memory_space<vmem>>, vector<8x512xf32>
    tpu.vector_store %arg3[%c0_30, %c256_31], %45 {strides = array<i32>} : memref<8x1024xf32, #tpu.memory_space<vmem>>, vector<8x512xf32>,
    %c0_32 = arith.constant 0 : index
    %c128 = arith.constant 128 : index
    %47 = vector.load %arg3[%c0_32, %c128] : memref<8x1024xf32, #tpu.memory_space<vmem>>, vector<8x512xf32>
    %48 = arith.addf %45, %47 : vector<8x512xf32>
    %c0_33 = arith.constant 0 : index
    %c256_34 = arith.constant 256 : index
    %49 = vector.load %arg3[%c0_33, %c256_34] : memref<8x1024xf32, #tpu.memory_space<vmem>>, vector<8x512xf32>
    tpu.vector_store %arg3[%c0_33, %c256_34], %48 {strides = array<i32>} : memref<8x1024xf32, #tpu.memory_space<vmem>>, vector<8x512xf32>,
    %c0_35 = arith.constant 0 : index
    %c0_36 = arith.constant 0 : index
    %50 = vector.load %arg3[%c0_35, %c0_36] : memref<8x1024xf32, #tpu.memory_space<vmem>>, vector<8x512xf32>
    %51 = arith.addf %48, %50 : vector<8x512xf32>
    %c0_37 = arith.constant 0 : index
    %c256_38 = arith.constant 256 : index
    %52 = vector.load %arg3[%c0_37, %c256_38] : memref<8x1024xf32, #tpu.memory_space<vmem>>, vector<8x512xf32>
    tpu.vector_store %arg3[%c0_37, %c256_38], %51 {strides = array<i32>} : memref<8x1024xf32, #tpu.memory_space<vmem>>, vector<8x512xf32>,
    %c0_39 = arith.constant 0 : index
    %c767 = arith.constant 767 : index
    %53 = vector.load %arg3[%c0_39, %c767] : memref<8x1024xf32, #tpu.memory_space<vmem>>, vector<8x1xf32>
    %54 = vector.shape_cast %53 : vector<8x1xf32> to vector<8x1xf32>
    %55 = vector.broadcast %54 : vector<8x1xf32> to vector<8x256xf32>
    %c0_40 = arith.constant 0 : index
    %c768 = arith.constant 768 : index
    %56 = vector.load %arg3[%c0_40, %c768] : memref<8x1024xf32, #tpu.memory_space<vmem>>, vector<8x256xf32>
    tpu.vector_store %arg3[%c0_40, %c768], %55 {strides = array<i32>} : memref<8x1024xf32, #tpu.memory_space<vmem>>, vector<8x256xf32>,
    %c0_41 = arith.constant 0 : index
    %c381 = arith.constant 381 : index
    %57 = vector.load %arg3[%c0_41, %c381] : memref<8x1024xf32, #tpu.memory_space<vmem>>, vector<8x512xf32>
    %c0_42 = arith.constant 0 : index
    %c130 = arith.constant 130 : index
    %58 = vector.load %arg3[%c0_42, %c130] : memref<8x1024xf32, #tpu.memory_space<vmem>>, vector<8x512xf32>
    %59 = arith.subf %57, %58 : vector<8x512xf32>
    %cst_43 = arith.constant 0.00398406386 : f32
    %60 = vector.broadcast %cst_43 : f32 to vector<8x512xf32>
    %61 = arith.mulf %59, %60 : vector<8x512xf32>
    %62 = arith.subf %22, %61 : vector<8x512xf32>
    %63 = arith.mulf %62, %62 : vector<8x512xf32>
    %c0_44 = arith.constant 0 : index
    %c256_45 = arith.constant 256 : index
    %64 = vector.load %arg3[%c0_44, %c256_45] : memref<8x1024xf32, #tpu.memory_space<vmem>>, vector<8x512xf32>
    tpu.vector_store %arg3[%c0_44, %c256_45], %63 {strides = array<i32>} : memref<8x1024xf32, #tpu.memory_space<vmem>>, vector<8x512xf32>,
    %c0_46 = arith.constant 0 : index
    %c255_47 = arith.constant 255 : index
    %65 = vector.load %arg3[%c0_46, %c255_47] : memref<8x1024xf32, #tpu.memory_space<vmem>>, vector<8x512xf32>
    %66 = arith.addf %63, %65 : vector<8x512xf32>
    %c0_48 = arith.constant 0 : index
    %c256_49 = arith.constant 256 : index
    %67 = vector.load %arg3[%c0_48, %c256_49] : memref<8x1024xf32, #tpu.memory_space<vmem>>, vector<8x512xf32>
    tpu.vector_store %arg3[%c0_48, %c256_49], %66 {strides = array<i32>} : memref<8x1024xf32, #tpu.memory_space<vmem>>, vector<8x512xf32>,
    %c0_50 = arith.constant 0 : index
    %c254_51 = arith.constant 254 : index
    %68 = vector.load %arg3[%c0_50, %c254_51] : memref<8x1024xf32, #tpu.memory_space<vmem>>, vector<8x512xf32>
    %69 = arith.addf %66, %68 : vector<8x512xf32>
    %c0_52 = arith.constant 0 : index
    %c256_53 = arith.constant 256 : index
    %70 = vector.load %arg3[%c0_52, %c256_53] : memref<8x1024xf32, #tpu.memory_space<vmem>>, vector<8x512xf32>
    tpu.vector_store %arg3[%c0_52, %c256_53], %69 {strides = array<i32>} : memref<8x1024xf32, #tpu.memory_space<vmem>>, vector<8x512xf32>,
    %c0_54 = arith.constant 0 : index
    %c252_55 = arith.constant 252 : index
    %71 = vector.load %arg3[%c0_54, %c252_55] : memref<8x1024xf32, #tpu.memory_space<vmem>>, vector<8x512xf32>
    %72 = arith.addf %69, %71 : vector<8x512xf32>
    %c0_56 = arith.constant 0 : index
    %c256_57 = arith.constant 256 : index
    %73 = vector.load %arg3[%c0_56, %c256_57] : memref<8x1024xf32, #tpu.memory_space<vmem>>, vector<8x512xf32>
    tpu.vector_store %arg3[%c0_56, %c256_57], %72 {strides = array<i32>} : memref<8x1024xf32, #tpu.memory_space<vmem>>, vector<8x512xf32>,
    %c0_58 = arith.constant 0 : index
    %c248_59 = arith.constant 248 : index
    %74 = vector.load %arg3[%c0_58, %c248_59] : memref<8x1024xf32, #tpu.memory_space<vmem>>, vector<8x512xf32>
    %75 = arith.addf %72, %74 : vector<8x512xf32>
    %c0_60 = arith.constant 0 : index
    %c256_61 = arith.constant 256 : index
    %76 = vector.load %arg3[%c0_60, %c256_61] : memref<8x1024xf32, #tpu.memory_space<vmem>>, vector<8x512xf32>
    tpu.vector_store %arg3[%c0_60, %c256_61], %75 {strides = array<i32>} : memref<8x1024xf32, #tpu.memory_space<vmem>>, vector<8x512xf32>,
    %c0_62 = arith.constant 0 : index
    %c240_63 = arith.constant 240 : index
    %77 = vector.load %arg3[%c0_62, %c240_63] : memref<8x1024xf32, #tpu.memory_space<vmem>>, vector<8x512xf32>
    %78 = arith.addf %75, %77 : vector<8x512xf32>
    %c0_64 = arith.constant 0 : index
    %c256_65 = arith.constant 256 : index
    %79 = vector.load %arg3[%c0_64, %c256_65] : memref<8x1024xf32, #tpu.memory_space<vmem>>, vector<8x512xf32>
    tpu.vector_store %arg3[%c0_64, %c256_65], %78 {strides = array<i32>} : memref<8x1024xf32, #tpu.memory_space<vmem>>, vector<8x512xf32>,
    %c0_66 = arith.constant 0 : index
    %c224_67 = arith.constant 224 : index
    %80 = vector.load %arg3[%c0_66, %c224_67] : memref<8x1024xf32, #tpu.memory_space<vmem>>, vector<8x512xf32>
    %81 = arith.addf %78, %80 : vector<8x512xf32>
    %c0_68 = arith.constant 0 : index
    %c256_69 = arith.constant 256 : index
    %82 = vector.load %arg3[%c0_68, %c256_69] : memref<8x1024xf32, #tpu.memory_space<vmem>>, vector<8x512xf32>
    tpu.vector_store %arg3[%c0_68, %c256_69], %81 {strides = array<i32>} : memref<8x1024xf32, #tpu.memory_space<vmem>>, vector<8x512xf32>,
    %c0_70 = arith.constant 0 : index
    %c192_71 = arith.constant 192 : index
    %83 = vector.load %arg3[%c0_70, %c192_71] : memref<8x1024xf32, #tpu.memory_space<vmem>>, vector<8x512xf32>
    %84 = arith.addf %81, %83 : vector<8x512xf32>
    %c0_72 = arith.constant 0 : index
    %c256_73 = arith.constant 256 : index
    %85 = vector.load %arg3[%c0_72, %c256_73] : memref<8x1024xf32, #tpu.memory_space<vmem>>, vector<8x512xf32>
    tpu.vector_store %arg3[%c0_72, %c256_73], %84 {strides = array<i32>} : memref<8x1024xf32, #tpu.memory_space<vmem>>, vector<8x512xf32>,
    %c0_74 = arith.constant 0 : index
    %c128_75 = arith.constant 128 : index
    %86 = vector.load %arg3[%c0_74, %c128_75] : memref<8x1024xf32, #tpu.memory_space<vmem>>, vector<8x512xf32>
    %87 = arith.addf %84, %86 : vector<8x512xf32>
    %c0_76 = arith.constant 0 : index
    %c256_77 = arith.constant 256 : index
    %88 = vector.load %arg3[%c0_76, %c256_77] : memref<8x1024xf32, #tpu.memory_space<vmem>>, vector<8x512xf32>
    tpu.vector_store %arg3[%c0_76, %c256_77], %87 {strides = array<i32>} : memref<8x1024xf32, #tpu.memory_space<vmem>>, vector<8x512xf32>,
    %c0_78 = arith.constant 0 : index
    %c0_79 = arith.constant 0 : index
    %89 = vector.load %arg3[%c0_78, %c0_79] : memref<8x1024xf32, #tpu.memory_space<vmem>>, vector<8x512xf32>
    %90 = arith.addf %87, %89 : vector<8x512xf32>
    %c0_80 = arith.constant 0 : index
    %c256_81 = arith.constant 256 : index
    %91 = vector.load %arg3[%c0_80, %c256_81] : memref<8x1024xf32, #tpu.memory_space<vmem>>, vector<8x512xf32>
    tpu.vector_store %arg3[%c0_80, %c256_81], %90 {strides = array<i32>} : memref<8x1024xf32, #tpu.memory_space<vmem>>, vector<8x512xf32>,
    %c0_82 = arith.constant 0 : index
    %c767_83 = arith.constant 767 : index
    %92 = vector.load %arg3[%c0_82, %c767_83] : memref<8x1024xf32, #tpu.memory_space<vmem>>, vector<8x1xf32>
    %93 = vector.shape_cast %92 : vector<8x1xf32> to vector<8x1xf32>
    %94 = vector.broadcast %93 : vector<8x1xf32> to vector<8x256xf32>
    %c0_84 = arith.constant 0 : index
    %c768_85 = arith.constant 768 : index
    %95 = vector.load %arg3[%c0_84, %c768_85] : memref<8x1024xf32, #tpu.memory_space<vmem>>, vector<8x256xf32>
    tpu.vector_store %arg3[%c0_84, %c768_85], %94 {strides = array<i32>} : memref<8x1024xf32, #tpu.memory_space<vmem>>, vector<8x256xf32>,
    %c0_86 = arith.constant 0 : index
    %c506 = arith.constant 506 : index
    %96 = vector.load %arg3[%c0_86, %c506] : memref<8x1024xf32, #tpu.memory_space<vmem>>, vector<8x512xf32>
    %c0_87 = arith.constant 0 : index
    %c5 = arith.constant 5 : index
    %97 = vector.load %arg3[%c0_87, %c5] : memref<8x1024xf32, #tpu.memory_space<vmem>>, vector<8x512xf32>
    %98 = arith.subf %96, %97 : vector<8x512xf32>
    %cst_88 = arith.constant 0.00199600798 : f32
    %99 = vector.broadcast %cst_88 : f32 to vector<8x512xf32>
    %100 = arith.mulf %98, %99 : vector<8x512xf32>
    %101 = math.sqrt %100 : vector<8x512xf32>
    %cst_89 = arith.constant 9.99999974E-6 : f32
    %102 = vector.broadcast %cst_89 : f32 to vector<8x512xf32>
    %103 = arith.addf %101, %102 : vector<8x512xf32>
    %104 = tpu.reciprocal %103 {approx = true} : vector<8x512xf32> -> vector<8x512xf32>
    %105 = arith.mulf %103, %104 : vector<8x512xf32>
    %cst_90 = arith.constant 2.000000e+00 : f32
    %106 = vector.broadcast %cst_90 : f32 to vector<8x512xf32>
    %107 = arith.subf %106, %105 : vector<8x512xf32>
    %108 = arith.mulf %104, %107 : vector<8x512xf32>
    %109 = arith.mulf %62, %108 : vector<8x512xf32>
    %c0_91 = arith.constant 0 : index
    %c0_92 = arith.constant 0 : index
    %110 = vector.load %arg2[%c0_91, %c0_92] : memref<8x512xf32, #tpu.memory_space<vmem>>, vector<8x512xf32>
    tpu.vector_store %arg2[%c0_91, %c0_92], %109 {strides = array<i32>} : memref<8x512xf32, #tpu.memory_space<vmem>>, vector<8x512xf32>,
    return
  }
  func.func @transform_0(%arg0: i32) -> (i32, i32) {
    %c0_i32 = arith.constant 0 : i32
    %c0_i32_0 = arith.constant 0 : i32
    return %arg0, %c0_i32 : i32, i32
  }
  func.func @transform_1(%arg0: i32) -> (i32, i32) {
    %c0_i32 = arith.constant 0 : i32
    %c0_i32_0 = arith.constant 0 : i32
    return %arg0, %c0_i32 : i32, i32
  }
}

</mosaic_0001>

<llo_original>
// kernel: tpu_custom_call.1
$region0: #{tpu_custom_call.1}
  #allocation0 [shape = 'u32[]', space=smem, size = 0x4, offset = 0x4, fixed_abs, tag = 'smem constant byte address 0x4 - core index']
  #allocation1 [shape = 'u32[144,128]{1,0:T(1,128)}', space=vmem, size = 0x12000, scoped, tag = 'internal scratch']
  #allocation2 [shape = 'f32[8,1024]{1,0:T(8,128)}', space=vmem, size = 0x8000, scoped, tag = 'scratch operand']
  %s0 = inlined_call_operand.hbm [shape: f32[8,512], index: 0, kind: input, shape index: {}]
  %s1 = inlined_call_operand.hbm [shape: f32[8,512], index: 1, kind: output, shape index: {}]
  %s2 = sld [smem:[#allocation0]]
  $region18: #{tpu_custom_call.1} parent=0
    _
  %s4 = ssub.s32 1, %s2
  %s5 = scalar_select 0, %s4, %s2
  $region1: #{tpu_custom_call.1} parent=0
    #allocation3 [shape = 'u8[16384]{0}', space=vmem, size = 0x4000, scoped, tag = 'input window, operand 0, single buffered']
    #allocation4 [shape = 's32[1]{0}', space=sflag, size = 0x4, scoped, tag = 'scoped memory for tpu_custom_call.1']
    #allocation5 [shape = 's32[1]{0}', space=sflag, size = 0x4, scoped, tag = 'scoped memory for tpu_custom_call.1']
    #allocation6 [shape = 'u8[16384]{0}', space=vmem, size = 0x4000, scoped, tag = 'output window, operand 0, single buffered']
    %6 = vsyncpa [#allocation4], 0
    %7 = vsyncpa [#allocation5], 0
    // Predicated region
    $region2: #{tpu_custom_call.1} parent=1 // pred_check
      _
    $region3: #{tpu_custom_call.1} parent=1 // pred_check_branch
      %9 = sbr.rel (0) target = $region5
    $region4: #{tpu_custom_call.1} parent=1 // pred_region
      %s11 = ssub.s32 512, 512
      %12 = vsyncadd [#allocation4], %s11
      %s14 = sshll.u32 [#allocation3], 4
      %s15 = int_to_ptr.vmem [resolvable:$true] %s14
      %17 = dma.hbm_to_vmem [thread:$0]  %s0, 512, %s15, [#allocation4]
    $region5: #{tpu_custom_call.1} parent=1 // pred_fallthru
      _
    // Predicated region
    $region6: #{tpu_custom_call.1} parent=1 // pred_check
      _
    $region7: #{tpu_custom_call.1} parent=1 // pred_check_branch
      %19 = sbr.rel (0) target = $region9
    $region8: #{tpu_custom_call.1} parent=1 // pred_region
      %20 = dma.done [#allocation4], 512
    $region9: #{tpu_custom_call.1} parent=1 // pred_fallthru
      _
    %v21 = vld [vmem:[#allocation3] sm:$0xff]
    %v22 = vld [vmem:[#allocation3 + $0x8] sm:$0xff]
    %v23 = vld [vmem:[#allocation3 + $0x10] sm:$0xff]
    %v24 = vld [vmem:[#allocation3 + $0x18] sm:$0xff]
    %v25 = vadd.f32 %v21, %v22
    %v26 = vadd.f32 %v25, %v23
    %v27 = vadd.f32 %v26, %v24
    %28 = vadd.xlane.f32.xlu0 %v27
    %v29 = vpop.xlane.xlu0 %28
    %v30 = vmul.f32 %v21, %v21
    %v31 = vmul.f32 %v22, %v22
    %v32 = vmul.f32 %v23, %v23
    %v33 = vmul.f32 %v24, %v24
    %v34 = vadd.f32 %v30, %v31
    %v35 = vadd.f32 %v34, %v32
    %v36 = vadd.f32 %v35, %v33
    %37 = vadd.xlane.f32.xlu0 %v36
    %v38 = vpop.xlane.xlu0 %37
    %v39 = vmul.f32 %v29, 0.001953125
    %v40 = vmul.f32 %v39, %v29
    %v41 = vsub.f32 %v38, %v40
    %v42 = vmul.f32 %v41, 0.0019569471
    %v43 = vmax.f32 %v42, 0.0
    %v44 = vsub.f32 %v21, %v39
    %v45 = vsub.f32 %v22, %v39
    %v46 = vsub.f32 %v23, %v39
    %v47 = vsub.f32 %v24, %v39
    %v48 = vrsqrt.pop %v43
    %v49 = vmul.f32 %v43, %v48
    %vm50 = vcmp.eq.f32.partialorder %v43, inf
    %v51 = vsel %vm50, %v43, %v49
    %vm52 = vcmp.eq.f32.partialorder %v43, 0.0
    %v53 = vand.u32 %v43, 2147483648
    %v54 = vsel %vm52, %v53, %v51
    %v55 = vadd.f32 %v54, 1e-05
    %v56 = vrcp.pop %v55
    %v57 = vmul.f32 1.0, %v56
    %v58 = vmul.f32 %v44, %v57
    %v59 = vmul.f32 %v45, %v57
    %v60 = vmul.f32 %v46, %v57
    %v61 = vmul.f32 %v47, %v57
    %62 = vst [vmem:[#allocation2] sm:$0xff] 0.0
    %63 = vst [vmem:[#allocation2 + $0x8] sm:$0xff] 0.0
    %64 = vst [vmem:[#allocation2 + $0x10] sm:$0xff] %v58
    %65 = vst [vmem:[#allocation2 + $0x18] sm:$0xff] %v59
    %66 = vst [vmem:[#allocation2 + $0x20] sm:$0xff] %v60
    %67 = vst [vmem:[#allocation2 + $0x28] sm:$0xff] %v61
    %v68 = vld [vmem:[#allocation2 + $0x8] sm:$0xff]
    %v69 = vld [vmem:[#allocation2 + $0x10] sm:$0xff]
    %v70 = vld [vmem:[#allocation2 + $0x18] sm:$0xff]
    %v71 = vld [vmem:[#allocation2 + $0x20] sm:$0xff]
    %v72 = vld [vmem:[#allocation2 + $0x28] sm:$0xff]
    %78 = vrot.lane.b32.xlu0 %v68, 1
    %v79 = vpop.permute.xlu0 %78
    %80 = vrot.lane.b32.xlu0 %v69, 1
    %v81 = vpop.permute.xlu0 %80
    %82 = vrot.lane.b32.xlu0 %v70, 1
    %v83 = vpop.permute.xlu0 %82
    %84 = vrot.lane.b32.xlu0 %v71, 1
    %v85 = vpop.permute.xlu0 %84
    %86 = vrot.lane.b32.xlu0 %v72, 1
    %v87 = vpop.permute.xlu0 %86
    %vm88 = vcmask 7168
    %v89 = vsel %vm88, %v79, %v81
    %v90 = vsel %vm88, %v81, %v83
    %v91 = vsel %vm88, %v83, %v85
    %v92 = vsel %vm88, %v85, %v87
    %v97 = vadd.f32 %v58, %v89
    %v98 = vadd.f32 %v59, %v90
    %v99 = vadd.f32 %v60, %v91
    %v100 = vadd.f32 %v61, %v92
    %101 = vst [vmem:[#allocation2 + $0x10] sm:$0xff] %v97
    %102 = vst [vmem:[#allocation2 + $0x18] sm:$0xff] %v98
    %103 = vst [vmem:[#allocation2 + $0x20] sm:$0xff] %v99
    %104 = vst [vmem:[#allocation2 + $0x28] sm:$0xff] %v100
    %v105 = vld [vmem:[#allocation2 + $0x8] sm:$0xff]
    %v106 = vld [vmem:[#allocation2 + $0x10] sm:$0xff]
    %v107 = vld [vmem:[#allocation2 + $0x18] sm:$0xff]
    %v108 = vld [vmem:[#allocation2 + $0x20] sm:$0xff]
    %v109 = vld [vmem:[#allocation2 + $0x28] sm:$0xff]
    %115 = vrot.lane.b32.xlu0 %v105, 2
    %v116 = vpop.permute.xlu0 %115
    %117 = vrot.lane.b32.xlu0 %v106, 2
    %v118 = vpop.permute.xlu0 %117
    %119 = vrot.lane.b32.xlu0 %v107, 2
    %v120 = vpop.permute.xlu0 %119
    %121 = vrot.lane.b32.xlu0 %v108, 2
    %v122 = vpop.permute.xlu0 %121
    %123 = vrot.lane.b32.xlu0 %v109, 2
    %v124 = vpop.permute.xlu0 %123
    %vm125 = vcmask 15360
    %v126 = vsel %vm125, %v116, %v118
    %v127 = vsel %vm125, %v118, %v120
    %v128 = vsel %vm125, %v120, %v122
    %v129 = vsel %vm125, %v122, %v124
    %v134 = vadd.f32 %v97, %v126
    %v135 = vadd.f32 %v98, %v127
    %v136 = vadd.f32 %v99, %v128
    %v137 = vadd.f32 %v100, %v129
    %138 = vst [vmem:[#allocation2 + $0x10] sm:$0xff] %v134
    %139 = vst [vmem:[#allocation2 + $0x18] sm:$0xff] %v135
    %140 = vst [vmem:[#allocation2 + $0x20] sm:$0xff] %v136
    %141 = vst [vmem:[#allocation2 + $0x28] sm:$0xff] %v137
    %v142 = vld [vmem:[#allocation2 + $0x8] sm:$0xff]
    %v143 = vld [vmem:[#allocation2 + $0x10] sm:$0xff]
    %v144 = vld [vmem:[#allocation2 + $0x18] sm:$0xff]
    %v145 = vld [vmem:[#allocation2 + $0x20] sm:$0xff]
    %v146 = vld [vmem:[#allocation2 + $0x28] sm:$0xff]
    %152 = vrot.lane.b32.xlu0 %v142, 4
    %v153 = vpop.permute.xlu0 %152
    %154 = vrot.lane.b32.xlu0 %v143, 4
    %v155 = vpop.permute.xlu0 %154
    %156 = vrot.lane.b32.xlu0 %v144, 4
    %v157 = vpop.permute.xlu0 %156
    %158 = vrot.lane.b32.xlu0 %v145, 4
    %v159 = vpop.permute.xlu0 %158
    %160 = vrot.lane.b32.xlu0 %v146, 4
    %v161 = vpop.permute.xlu0 %160
    %vm162 = vcmask 31744
    %v163 = vsel %vm162, %v153, %v155
    %v164 = vsel %vm162, %v155, %v157
    %v165 = vsel %vm162, %v157, %v159
    %v166 = vsel %vm162, %v159, %v161
    %v171 = vadd.f32 %v134, %v163
    %v172 = vadd.f32 %v135, %v164
    %v173 = vadd.f32 %v136, %v165
    %v174 = vadd.f32 %v137, %v166
    %175 = vst [vmem:[#allocation2 + $0x10] sm:$0xff] %v171
    %176 = vst [vmem:[#allocation2 + $0x18] sm:$0xff] %v172
    %177 = vst [vmem:[#allocation2 + $0x20] sm:$0xff] %v173
    %178 = vst [vmem:[#allocation2 + $0x28] sm:$0xff] %v174
    %v179 = vld [vmem:[#allocation2 + $0x8] sm:$0xff]
    %v180 = vld [vmem:[#allocation2 + $0x10] sm:$0xff]
    %v181 = vld [vmem:[#allocation2 + $0x18] sm:$0xff]
    %v182 = vld [vmem:[#allocation2 + $0x20] sm:$0xff]
    %v183 = vld [vmem:[#allocation2 + $0x28] sm:$0xff]
    %189 = vrot.lane.b32.xlu0 %v179, 8
    %v190 = vpop.permute.xlu0 %189
    %191 = vrot.lane.b32.xlu0 %v180, 8
    %v192 = vpop.permute.xlu0 %191
    %193 = vrot.lane.b32.xlu0 %v181, 8
    %v194 = vpop.permute.xlu0 %193
    %195 = vrot.lane.b32.xlu0 %v182, 8
    %v196 = vpop.permute.xlu0 %195
    %197 = vrot.lane.b32.xlu0 %v183, 8
    %v198 = vpop.permute.xlu0 %197
    %vm199 = vcmask 64512
    %v200 = vsel %vm199, %v190, %v192
    %v201 = vsel %vm199, %v192, %v194
    %v202 = vsel %vm199, %v194, %v196
    %v203 = vsel %vm199, %v196, %v198
    %v208 = vadd.f32 %v171, %v200
    %v209 = vadd.f32 %v172, %v201
    %v210 = vadd.f32 %v173, %v202
    %v211 = vadd.f32 %v174, %v203
    %212 = vst [vmem:[#allocation2 + $0x10] sm:$0xff] %v208
    %213 = vst [vmem:[#allocation2 + $0x18] sm:$0xff] %v209
    %214 = vst [vmem:[#allocation2 + $0x20] sm:$0xff] %v210
    %215 = vst [vmem:[#allocation2 + $0x28] sm:$0xff] %v211
    %v216 = vld [vmem:[#allocation2 + $0x8] sm:$0xff]
    %v217 = vld [vmem:[#allocation2 + $0x10] sm:$0xff]
    %v218 = vld [vmem:[#allocation2 + $0x18] sm:$0xff]
    %v219 = vld [vmem:[#allocation2 + $0x20] sm:$0xff]
    %v220 = vld [vmem:[#allocation2 + $0x28] sm:$0xff]
    %226 = vrot.lane.b32.xlu0 %v216, 16
    %v227 = vpop.permute.xlu0 %226
    %228 = vrot.lane.b32.xlu0 %v217, 16
    %v229 = vpop.permute.xlu0 %228
    %230 = vrot.lane.b32.xlu0 %v218, 16
    %v231 = vpop.permute.xlu0 %230
    %232 = vrot.lane.b32.xlu0 %v219, 16
    %v233 = vpop.permute.xlu0 %232
    %234 = vrot.lane.b32.xlu0 %v220, 16
    %v235 = vpop.permute.xlu0 %234
    %vm236 = vcmask 130048
    %v237 = vsel %vm236, %v227, %v229
    %v238 = vsel %vm236, %v229, %v231
    %v239 = vsel %vm236, %v231, %v233
    %v240 = vsel %vm236, %v233, %v235
    %v245 = vadd.f32 %v208, %v237
    %v246 = vadd.f32 %v209, %v238
    %v247 = vadd.f32 %v210, %v239
    %v248 = vadd.f32 %v211, %v240
    %249 = vst [vmem:[#allocation2 + $0x10] sm:$0xff] %v245
    %250 = vst [vmem:[#allocation2 + $0x18] sm:$0xff] %v246
    %251 = vst [vmem:[#allocation2 + $0x20] sm:$0xff] %v247
    %252 = vst [vmem:[#allocation2 + $0x28] sm:$0xff] %v248
    %v253 = vld [vmem:[#allocation2 + $0x8] sm:$0xff]
    %v254 = vld [vmem:[#allocation2 + $0x10] sm:$0xff]
    %v255 = vld [vmem:[#allocation2 + $0x18] sm:$0xff]
    %v256 = vld [vmem:[#allocation2 + $0x20] sm:$0xff]
    %v257 = vld [vmem:[#allocation2 + $0x28] sm:$0xff]
    %263 = vrot.lane.b32.xlu0 %v253, 32
    %v264 = vpop.permute.xlu0 %263
    %265 = vrot.lane.b32.xlu0 %v254, 32
    %v266 = vpop.permute.xlu0 %265
    %267 = vrot.lane.b32.xlu0 %v255, 32
    %v268 = vpop.permute.xlu0 %267
    %269 = vrot.lane.b32.xlu0 %v256, 32
    %v270 = vpop.permute.xlu0 %269
    %271 = vrot.lane.b32.xlu0 %v257, 32
    %v272 = vpop.permute.xlu0 %271
    %vm273 = vcmask 261120
    %v274 = vsel %vm273, %v264, %v266
    %v275 = vsel %vm273, %v266, %v268
    %v276 = vsel %vm273, %v268, %v270
    %v277 = vsel %vm273, %v270, %v272
    %v282 = vadd.f32 %v245, %v274
    %v283 = vadd.f32 %v246, %v275
    %v284 = vadd.f32 %v247, %v276
    %v285 = vadd.f32 %v248, %v277
    %286 = vst [vmem:[#allocation2 + $0x10] sm:$0xff] %v282
    %287 = vst [vmem:[#allocation2 + $0x18] sm:$0xff] %v283
    %288 = vst [vmem:[#allocation2 + $0x20] sm:$0xff] %v284
    %289 = vst [vmem:[#allocation2 + $0x28] sm:$0xff] %v285
    %v290 = vld [vmem:[#allocation2 + $0x8] sm:$0xff]
    %v291 = vld [vmem:[#allocation2 + $0x10] sm:$0xff]
    %v292 = vld [vmem:[#allocation2 + $0x18] sm:$0xff]
    %v293 = vld [vmem:[#allocation2 + $0x20] sm:$0xff]
    %v294 = vld [vmem:[#allocation2 + $0x28] sm:$0xff]
    %300 = vrot.lane.b32.xlu0 %v290, 64
    %v301 = vpop.permute.xlu0 %300
    %302 = vrot.lane.b32.xlu0 %v291, 64
    %v303 = vpop.permute.xlu0 %302
    %304 = vrot.lane.b32.xlu0 %v292, 64
    %v305 = vpop.permute.xlu0 %304
    %306 = vrot.lane.b32.xlu0 %v293, 64
    %v307 = vpop.permute.xlu0 %306
    %308 = vrot.lane.b32.xlu0 %v294, 64
    %v309 = vpop.permute.xlu0 %308
    %vm310 = vcmask 523264
    %v311 = vsel %vm310, %v301, %v303
    %v312 = vsel %vm310, %v303, %v305
    %v313 = vsel %vm310, %v305, %v307
    %v314 = vsel %vm310, %v307, %v309
    %v319 = vadd.f32 %v282, %v311
    %v320 = vadd.f32 %v283, %v312
    %v321 = vadd.f32 %v284, %v313
    %v322 = vadd.f32 %v285, %v314
    %323 = vst [vmem:[#allocation2 + $0x10] sm:$0xff] %v319
    %324 = vst [vmem:[#allocation2 + $0x18] sm:$0xff] %v320
    %325 = vst [vmem:[#allocation2 + $0x20] sm:$0xff] %v321
    %326 = vst [vmem:[#allocation2 + $0x28] sm:$0xff] %v322
    %v327 = vld [vmem:[#allocation2 + $0x8] sm:$0xff]
    %v328 = vld [vmem:[#allocation2 + $0x10] sm:$0xff]
    %v329 = vld [vmem:[#allocation2 + $0x18] sm:$0xff]
    %v330 = vld [vmem:[#allocation2 + $0x20] sm:$0xff]
    %v331 = vadd.f32 %v319, %v327
    %v332 = vadd.f32 %v320, %v328
    %v333 = vadd.f32 %v321, %v329
    %v334 = vadd.f32 %v322, %v330
    %335 = vst [vmem:[#allocation2 + $0x10] sm:$0xff] %v331
    %336 = vst [vmem:[#allocation2 + $0x18] sm:$0xff] %v332
    %337 = vst [vmem:[#allocation2 + $0x20] sm:$0xff] %v333
    %338 = vst [vmem:[#allocation2 + $0x28] sm:$0xff] %v334
    %v339 = vld [vmem:[#allocation2] sm:$0xff]
    %v340 = vld [vmem:[#allocation2 + $0x8] sm:$0xff]
    %v341 = vld [vmem:[#allocation2 + $0x10] sm:$0xff]
    %v342 = vld [vmem:[#allocation2 + $0x18] sm:$0xff]
    %v343 = vadd.f32 %v331, %v339
    %v344 = vadd.f32 %v332, %v340
    %v345 = vadd.f32 %v333, %v341
    %v346 = vadd.f32 %v334, %v342
    %347 = vst [vmem:[#allocation2 + $0x10] sm:$0xff] %v343
    %348 = vst [vmem:[#allocation2 + $0x18] sm:$0xff] %v344
    %349 = vst [vmem:[#allocation2 + $0x20] sm:$0xff] %v345
    %350 = vst [vmem:[#allocation2 + $0x28] sm:$0xff] %v346
    %v351 = vld [vmem:[#allocation2 + $0x28] sm:$0xff]
    %353 = vset.pattern.permute.xlu0 127
    %354 = vperm.xlu0 %353, %v351
    %v355 = vpop.permute.xlu0 %354
    %357 = vst [vmem:[#allocation2 + $0x30] sm:$0xff] %v355
    %358 = vst [vmem:[#allocation2 + $0x38] sm:$0xff] %v355
    %v359 = vld [vmem:[#allocation2 + $0x10] sm:$0xff]
    %v360 = vld [vmem:[#allocation2 + $0x18] sm:$0xff]
    %v361 = vld [vmem:[#allocation2 + $0x20] sm:$0xff]
    %v362 = vld [vmem:[#allocation2 + $0x28] sm:$0xff]
    %v363 = vld [vmem:[#allocation2 + $0x30] sm:$0xff]
    %v364 = vld [vmem:[#allocation2 + $0x8] sm:$0xff]
    %370 = vrot.lane.b32.xlu0 %v364, 123
    %v371 = vpop.permute.xlu0 %370
    %372 = vrot.lane.b32.xlu0 %v359, 123
    %v373 = vpop.permute.xlu0 %372
    %374 = vrot.lane.b32.xlu0 %v360, 123
    %v375 = vpop.permute.xlu0 %374
    %376 = vrot.lane.b32.xlu0 %v361, 123
    %v377 = vpop.permute.xlu0 %376
    %378 = vrot.lane.b32.xlu0 %v362, 123
    %v379 = vpop.permute.xlu0 %378
    %vm380 = vcmask 1006592
    %v381 = vsel %vm380, %v371, %v373
    %v382 = vsel %vm380, %v373, %v375
    %v383 = vsel %vm380, %v375, %v377
    %v384 = vsel %vm380, %v377, %v379
    %v390 = vsub.f32 %v359, %v371
    %v391 = vsub.f32 %v360, %v381
    %v392 = vsub.f32 %v361, %v382
    %v393 = vsub.f32 %v362, %v383
    %v394 = vsub.f32 %v363, %v384
    %v395 = vmul.f32 %v390, 0.003984064
    %v396 = vmul.f32 %v391, 0.003984064
    %v397 = vmul.f32 %v392, 0.003984064
    %v398 = vmul.f32 %v393, 0.003984064
    %v399 = vmul.f32 %v394, 0.003984064
    %405 = vrot.lane.b32.xlu0 %v395, 3
    %v406 = vpop.permute.xlu0 %405
    %407 = vrot.lane.b32.xlu0 %v396, 3
    %v408 = vpop.permute.xlu0 %407
    %409 = vrot.lane.b32.xlu0 %v397, 3
    %v410 = vpop.permute.xlu0 %409
    %411 = vrot.lane.b32.xlu0 %v398, 3
    %v412 = vpop.permute.xlu0 %411
    %413 = vrot.lane.b32.xlu0 %v399, 3
    %v414 = vpop.permute.xlu0 %413
    %vm415 = vcmask 23552
    %v416 = vsel %vm415, %v406, %v408
    %v417 = vsel %vm415, %v408, %v410
    %v418 = vsel %vm415, %v410, %v412
    %v419 = vsel %vm415, %v412, %v414
    %v424 = vsub.f32 %v58, %v416
    %v425 = vsub.f32 %v59, %v417
    %v426 = vsub.f32 %v60, %v418
    %v427 = vsub.f32 %v61, %v419
    %v428 = vmul.f32 %v424, %v424
    %v429 = vmul.f32 %v425, %v425
    %v430 = vmul.f32 %v426, %v426
    %v431 = vmul.f32 %v427, %v427
    %432 = vst [vmem:[#allocation2 + $0x10] sm:$0xff] %v428
    %433 = vst [vmem:[#allocation2 + $0x18] sm:$0xff] %v429
    %434 = vst [vmem:[#allocation2 + $0x20] sm:$0xff] %v430
    %435 = vst [vmem:[#allocation2 + $0x28] sm:$0xff] %v431
    %v436 = vld [vmem:[#allocation2 + $0x8] sm:$0xff]
    %v437 = vld [vmem:[#allocation2 + $0x10] sm:$0xff]
    %v438 = vld [vmem:[#allocation2 + $0x18] sm:$0xff]
    %v439 = vld [vmem:[#allocation2 + $0x20] sm:$0xff]
    %v440 = vld [vmem:[#allocation2 + $0x28] sm:$0xff]
    %446 = vrot.lane.b32.xlu0 %v436, 1
    %v447 = vpop.permute.xlu0 %446
    %448 = vrot.lane.b32.xlu0 %v437, 1
    %v449 = vpop.permute.xlu0 %448
    %450 = vrot.lane.b32.xlu0 %v438, 1
    %v451 = vpop.permute.xlu0 %450
    %452 = vrot.lane.b32.xlu0 %v439, 1
    %v453 = vpop.permute.xlu0 %452
    %454 = vrot.lane.b32.xlu0 %v440, 1
    %v455 = vpop.permute.xlu0 %454
    %v456 = vsel %vm88, %v447, %v449
    %v457 = vsel %vm88, %v449, %v451
    %v458 = vsel %vm88, %v451, %v453
    %v459 = vsel %vm88, %v453, %v455
    %v464 = vadd.f32 %v428, %v456
    %v465 = vadd.f32 %v429, %v457
    %v466 = vadd.f32 %v430, %v458
    %v467 = vadd.f32 %v431, %v459
    %468 = vst [vmem:[#allocation2 + $0x10] sm:$0xff] %v464
    %469 = vst [vmem:[#allocation2 + $0x18] sm:$0xff] %v465
    %470 = vst [vmem:[#allocation2 + $0x20] sm:$0xff] %v466
    %471 = vst [vmem:[#allocation2 + $0x28] sm:$0xff] %v467
    %v472 = vld [vmem:[#allocation2 + $0x8] sm:$0xff]
    %v473 = vld [vmem:[#allocation2 + $0x10] sm:$0xff]
    %v474 = vld [vmem:[#allocation2 + $0x18] sm:$0xff]
    %v475 = vld [vmem:[#allocation2 + $0x20] sm:$0xff]
    %v476 = vld [vmem:[#allocation2 + $0x28] sm:$0xff]
    %482 = vrot.lane.b32.xlu0 %v472, 2
    %v483 = vpop.permute.xlu0 %482
    %484 = vrot.lane.b32.xlu0 %v473, 2
    %v485 = vpop.permute.xlu0 %484
    %486 = vrot.lane.b32.xlu0 %v474, 2
    %v487 = vpop.permute.xlu0 %486
    %488 = vrot.lane.b32.xlu0 %v475, 2
    %v489 = vpop.permute.xlu0 %488
    %490 = vrot.lane.b32.xlu0 %v476, 2
    %v491 = vpop.permute.xlu0 %490
    %v492 = vsel %vm125, %v483, %v485
    %v493 = vsel %vm125, %v485, %v487
    %v494 = vsel %vm125, %v487, %v489
    %v495 = vsel %vm125, %v489, %v491
    %v500 = vadd.f32 %v464, %v492
    %v501 = vadd.f32 %v465, %v493
    %v502 = vadd.f32 %v466, %v494
    %v503 = vadd.f32 %v467, %v495
    %504 = vst [vmem:[#allocation2 + $0x10] sm:$0xff] %v500
    %505 = vst [vmem:[#allocation2 + $0x18] sm:$0xff] %v501
    %506 = vst [vmem:[#allocation2 + $0x20] sm:$0xff] %v502
    %507 = vst [vmem:[#allocation2 + $0x28] sm:$0xff] %v503
    %v508 = vld [vmem:[#allocation2 + $0x8] sm:$0xff]
    %v509 = vld [vmem:[#allocation2 + $0x10] sm:$0xff]
    %v510 = vld [vmem:[#allocation2 + $0x18] sm:$0xff]
    %v511 = vld [vmem:[#allocation2 + $0x20] sm:$0xff]
    %v512 = vld [vmem:[#allocation2 + $0x28] sm:$0xff]
    %518 = vrot.lane.b32.xlu0 %v508, 4
    %v519 = vpop.permute.xlu0 %518
    %520 = vrot.lane.b32.xlu0 %v509, 4
    %v521 = vpop.permute.xlu0 %520
    %522 = vrot.lane.b32.xlu0 %v510, 4
    %v523 = vpop.permute.xlu0 %522
    %524 = vrot.lane.b32.xlu0 %v511, 4
    %v525 = vpop.permute.xlu0 %524
    %526 = vrot.lane.b32.xlu0 %v512, 4
    %v527 = vpop.permute.xlu0 %526
    %v528 = vsel %vm162, %v519, %v521
    %v529 = vsel %vm162, %v521, %v523
    %v530 = vsel %vm162, %v523, %v525
    %v531 = vsel %vm162, %v525, %v527
    %v536 = vadd.f32 %v500, %v528
    %v537 = vadd.f32 %v501, %v529
    %v538 = vadd.f32 %v502, %v530
    %v539 = vadd.f32 %v503, %v531
    %540 = vst [vmem:[#allocation2 + $0x10] sm:$0xff] %v536
    %541 = vst [vmem:[#allocation2 + $0x18] sm:$0xff] %v537
    %542 = vst [vmem:[#allocation2 + $0x20] sm:$0xff] %v538
    %543 = vst [vmem:[#allocation2 + $0x28] sm:$0xff] %v539
    %v544 = vld [vmem:[#allocation2 + $0x8] sm:$0xff]
    %v545 = vld [vmem:[#allocation2 + $0x10] sm:$0xff]
    %v546 = vld [vmem:[#allocation2 + $0x18] sm:$0xff]
    %v547 = vld [vmem:[#allocation2 + $0x20] sm:$0xff]
    %v548 = vld [vmem:[#allocation2 + $0x28] sm:$0xff]
    %554 = vrot.lane.b32.xlu0 %v544, 8
    %v555 = vpop.permute.xlu0 %554
    %556 = vrot.lane.b32.xlu0 %v545, 8
    %v557 = vpop.permute.xlu0 %556
    %558 = vrot.lane.b32.xlu0 %v546, 8
    %v559 = vpop.permute.xlu0 %558
    %560 = vrot.lane.b32.xlu0 %v547, 8
    %v561 = vpop.permute.xlu0 %560
    %562 = vrot.lane.b32.xlu0 %v548, 8
    %v563 = vpop.permute.xlu0 %562
    %v564 = vsel %vm199, %v555, %v557
    %v565 = vsel %vm199, %v557, %v559
    %v566 = vsel %vm199, %v559, %v561
    %v567 = vsel %vm199, %v561, %v563
    %v572 = vadd.f32 %v536, %v564
    %v573 = vadd.f32 %v537, %v565
    %v574 = vadd.f32 %v538, %v566
    %v575 = vadd.f32 %v539, %v567
    %576 = vst [vmem:[#allocation2 + $0x10] sm:$0xff] %v572
    %577 = vst [vmem:[#allocation2 + $0x18] sm:$0xff] %v573
    %578 = vst [vmem:[#allocation2 + $0x20] sm:$0xff] %v574
    %579 = vst [vmem:[#allocation2 + $0x28] sm:$0xff] %v575
    %v580 = vld [vmem:[#allocation2 + $0x8] sm:$0xff]
    %v581 = vld [vmem:[#allocation2 + $0x10] sm:$0xff]
    %v582 = vld [vmem:[#allocation2 + $0x18] sm:$0xff]
    %v583 = vld [vmem:[#allocation2 + $0x20] sm:$0xff]
    %v584 = vld [vmem:[#allocation2 + $0x28] sm:$0xff]
    %590 = vrot.lane.b32.xlu0 %v580, 16
    %v591 = vpop.permute.xlu0 %590
    %592 = vrot.lane.b32.xlu0 %v581, 16
    %v593 = vpop.permute.xlu0 %592
    %594 = vrot.lane.b32.xlu0 %v582, 16
    %v595 = vpop.permute.xlu0 %594
    %596 = vrot.lane.b32.xlu0 %v583, 16
    %v597 = vpop.permute.xlu0 %596
    %598 = vrot.lane.b32.xlu0 %v584, 16
    %v599 = vpop.permute.xlu0 %598
    %v600 = vsel %vm236, %v591, %v593
    %v601 = vsel %vm236, %v593, %v595
    %v602 = vsel %vm236, %v595, %v597
    %v603 = vsel %vm236, %v597, %v599
    %v608 = vadd.f32 %v572, %v600
    %v609 = vadd.f32 %v573, %v601
    %v610 = vadd.f32 %v574, %v602
    %v611 = vadd.f32 %v575, %v603
    %612 = vst [vmem:[#allocation2 + $0x10] sm:$0xff] %v608
    %613 = vst [vmem:[#allocation2 + $0x18] sm:$0xff] %v609
    %614 = vst [vmem:[#allocation2 + $0x20] sm:$0xff] %v610
    %615 = vst [vmem:[#allocation2 + $0x28] sm:$0xff] %v611
    %v616 = vld [vmem:[#allocation2 + $0x8] sm:$0xff]
    %v617 = vld [vmem:[#allocation2 + $0x10] sm:$0xff]
    %v618 = vld [vmem:[#allocation2 + $0x18] sm:$0xff]
    %v619 = vld [vmem:[#allocation2 + $0x20] sm:$0xff]
    %v620 = vld [vmem:[#allocation2 + $0x28] sm:$0xff]
    %626 = vrot.lane.b32.xlu0 %v616, 32
    %v627 = vpop.permute.xlu0 %626
    %628 = vrot.lane.b32.xlu0 %v617, 32
    %v629 = vpop.permute.xlu0 %628
    %630 = vrot.lane.b32.xlu0 %v618, 32
    %v631 = vpop.permute.xlu0 %630
    %632 = vrot.lane.b32.xlu0 %v619, 32
    %v633 = vpop.permute.xlu0 %632
    %634 = vrot.lane.b32.xlu0 %v620, 32
    %v635 = vpop.permute.xlu0 %634
    %v636 = vsel %vm273, %v627, %v629
    %v637 = vsel %vm273, %v629, %v631
    %v638 = vsel %vm273, %v631, %v633
    %v639 = vsel %vm273, %v633, %v635
    %v644 = vadd.f32 %v608, %v636
    %v645 = vadd.f32 %v609, %v637
    %v646 = vadd.f32 %v610, %v638
    %v647 = vadd.f32 %v611, %v639
    %648 = vst [vmem:[#allocation2 + $0x10] sm:$0xff] %v644
    %649 = vst [vmem:[#allocation2 + $0x18] sm:$0xff] %v645
    %650 = vst [vmem:[#allocation2 + $0x20] sm:$0xff] %v646
    %651 = vst [vmem:[#allocation2 + $0x28] sm:$0xff] %v647
    %v652 = vld [vmem:[#allocation2 + $0x8] sm:$0xff]
    %v653 = vld [vmem:[#allocation2 + $0x10] sm:$0xff]
    %v654 = vld [vmem:[#allocation2 + $0x18] sm:$0xff]
    %v655 = vld [vmem:[#allocation2 + $0x20] sm:$0xff]
    %v656 = vld [vmem:[#allocation2 + $0x28] sm:$0xff]
    %662 = vrot.lane.b32.xlu0 %v652, 64
    %v663 = vpop.permute.xlu0 %662
    %664 = vrot.lane.b32.xlu0 %v653, 64
    %v665 = vpop.permute.xlu0 %664
    %666 = vrot.lane.b32.xlu0 %v654, 64
    %v667 = vpop.permute.xlu0 %666
    %668 = vrot.lane.b32.xlu0 %v655, 64
    %v669 = vpop.permute.xlu0 %668
    %670 = vrot.lane.b32.xlu0 %v656, 64
    %v671 = vpop.permute.xlu0 %670
    %v672 = vsel %vm310, %v663, %v665
    %v673 = vsel %vm310, %v665, %v667
    %v674 = vsel %vm310, %v667, %v669
    %v675 = vsel %vm310, %v669, %v671
    %v680 = vadd.f32 %v644, %v672
    %v681 = vadd.f32 %v645, %v673
    %v682 = vadd.f32 %v646, %v674
    %v683 = vadd.f32 %v647, %v675
    %684 = vst [vmem:[#allocation2 + $0x10] sm:$0xff] %v680
    %685 = vst [vmem:[#allocation2 + $0x18] sm:$0xff] %v681
    %686 = vst [vmem:[#allocation2 + $0x20] sm:$0xff] %v682
    %687 = vst [vmem:[#allocation2 + $0x28] sm:$0xff] %v683
    %v688 = vld [vmem:[#allocation2 + $0x8] sm:$0xff]
    %v689 = vld [vmem:[#allocation2 + $0x10] sm:$0xff]
    %v690 = vld [vmem:[#allocation2 + $0x18] sm:$0xff]
    %v691 = vld [vmem:[#allocation2 + $0x20] sm:$0xff]
    %v692 = vadd.f32 %v680, %v688
    %v693 = vadd.f32 %v681, %v689
    %v694 = vadd.f32 %v682, %v690
    %v695 = vadd.f32 %v683, %v691
    %696 = vst [vmem:[#allocation2 + $0x10] sm:$0xff] %v692
    %697 = vst [vmem:[#allocation2 + $0x18] sm:$0xff] %v693
    %698 = vst [vmem:[#allocation2 + $0x20] sm:$0xff] %v694
    %699 = vst [vmem:[#allocation2 + $0x28] sm:$0xff] %v695
    %v700 = vld [vmem:[#allocation2] sm:$0xff]
    %v701 = vld [vmem:[#allocation2 + $0x8] sm:$0xff]
    %v702 = vld [vmem:[#allocation2 + $0x10] sm:$0xff]
    %v703 = vld [vmem:[#allocation2 + $0x18] sm:$0xff]
    %v704 = vadd.f32 %v692, %v700
    %v705 = vadd.f32 %v693, %v701
    %v706 = vadd.f32 %v694, %v702
    %v707 = vadd.f32 %v695, %v703
    %708 = vst [vmem:[#allocation2 + $0x10] sm:$0xff] %v704
    %709 = vst [vmem:[#allocation2 + $0x18] sm:$0xff] %v705
    %710 = vst [vmem:[#allocation2 + $0x20] sm:$0xff] %v706
    %711 = vst [vmem:[#allocation2 + $0x28] sm:$0xff] %v707
    %v712 = vld [vmem:[#allocation2 + $0x28] sm:$0xff]
    %714 = vset.pattern.permute.xlu0 127
    %715 = vperm.xlu0 %714, %v712
    %v716 = vpop.permute.xlu0 %715
    %718 = vst [vmem:[#allocation2 + $0x30] sm:$0xff] %v716
    %719 = vst [vmem:[#allocation2 + $0x38] sm:$0xff] %v716
    %v720 = vld [vmem:[#allocation2 + $0x18] sm:$0xff]
    %v721 = vld [vmem:[#allocation2 + $0x20] sm:$0xff]
    %v722 = vld [vmem:[#allocation2 + $0x28] sm:$0xff]
    %v723 = vld [vmem:[#allocation2 + $0x30] sm:$0xff]
    %v724 = vld [vmem:[#allocation2 + $0x38] sm:$0xff]
    %v725 = vld [vmem:[#allocation2] sm:$0xff]
    %v726 = vld [vmem:[#allocation2 + $0x8] sm:$0xff]
    %v727 = vld [vmem:[#allocation2 + $0x10] sm:$0xff]
    %v728 = vld [vmem:[#allocation2 + $0x18] sm:$0xff]
    %v729 = vld [vmem:[#allocation2 + $0x20] sm:$0xff]
    %735 = vrot.lane.b32.xlu0 %v725, 117
    %v736 = vpop.permute.xlu0 %735
    %737 = vrot.lane.b32.xlu0 %v726, 117
    %v738 = vpop.permute.xlu0 %737
    %739 = vrot.lane.b32.xlu0 %v727, 117
    %v740 = vpop.permute.xlu0 %739
    %741 = vrot.lane.b32.xlu0 %v728, 117
    %v742 = vpop.permute.xlu0 %741
    %743 = vrot.lane.b32.xlu0 %v729, 117
    %v744 = vpop.permute.xlu0 %743
    %vm745 = vcmask 957440
    %v746 = vsel %vm745, %v736, %v738
    %v747 = vsel %vm745, %v738, %v740
    %v748 = vsel %vm745, %v740, %v742
    %v749 = vsel %vm745, %v742, %v744
    %v755 = vsub.f32 %v720, %v736
    %v756 = vsub.f32 %v721, %v746
    %v757 = vsub.f32 %v722, %v747
    %v758 = vsub.f32 %v723, %v748
    %v759 = vsub.f32 %v724, %v749
    %v760 = vmul.f32 %v755, 0.001996008
    %v761 = vmul.f32 %v756, 0.001996008
    %v762 = vmul.f32 %v757, 0.001996008
    %v763 = vmul.f32 %v758, 0.001996008
    %v764 = vmul.f32 %v759, 0.001996008
    %v765 = vrsqrt.pop %v760
    %v766 = vmul.f32 %v760, %v765
    %vm767 = vcmp.eq.f32.partialorder %v760, inf
    %v768 = vsel %vm767, %v760, %v766
    %vm769 = vcmp.eq.f32.partialorder %v760, 0.0
    %v770 = vand.u32 %v760, 2147483648
    %v771 = vsel %vm769, %v770, %v768
    %v772 = vrsqrt.pop %v761
    %v773 = vmul.f32 %v761, %v772
    %vm774 = vcmp.eq.f32.partialorder %v761, inf
    %v775 = vsel %vm774, %v761, %v773
    %vm776 = vcmp.eq.f32.partialorder %v761, 0.0
    %v777 = vand.u32 %v761, 2147483648
    %v778 = vsel %vm776, %v777, %v775
    %v779 = vrsqrt.pop %v762
    %v780 = vmul.f32 %v762, %v779
    %vm781 = vcmp.eq.f32.partialorder %v762, inf
    %v782 = vsel %vm781, %v762, %v780
    %vm783 = vcmp.eq.f32.partialorder %v762, 0.0
    %v784 = vand.u32 %v762, 2147483648
    %v785 = vsel %vm783, %v784, %v782
    %v786 = vrsqrt.pop %v763
    %v787 = vmul.f32 %v763, %v786
    %vm788 = vcmp.eq.f32.partialorder %v763, inf
    %v789 = vsel %vm788, %v763, %v787
    %vm790 = vcmp.eq.f32.partialorder %v763, 0.0
    %v791 = vand.u32 %v763, 2147483648
    %v792 = vsel %vm790, %v791, %v789
    %v793 = vrsqrt.pop %v764
    %v794 = vmul.f32 %v764, %v793
    %vm795 = vcmp.eq.f32.partialorder %v764, inf
    %v796 = vsel %vm795, %v764, %v794
    %vm797 = vcmp.eq.f32.partialorder %v764, 0.0
    %v798 = vand.u32 %v764, 2147483648
    %v799 = vsel %vm797, %v798, %v796
    %v800 = vadd.f32 %v771, 1e-05
    %v801 = vadd.f32 %v778, 1e-05
    %v802 = vadd.f32 %v785, 1e-05
    %v803 = vadd.f32 %v792, 1e-05
    %v804 = vadd.f32 %v799, 1e-05
    %v805 = vrcp.pop %v800
    %v806 = vrcp.pop %v801
    %v807 = vrcp.pop %v802
    %v808 = vrcp.pop %v803
    %v809 = vrcp.pop %v804
    %v810 = vmul.f32 %v800, %v805
    %v811 = vmul.f32 %v801, %v806
    %v812 = vmul.f32 %v802, %v807
    %v813 = vmul.f32 %v803, %v808
    %v814 = vmul.f32 %v804, %v809
    %v815 = vsub.f32 2.0, %v810
    %v816 = vsub.f32 2.0, %v811
    %v817 = vsub.f32 2.0, %v812
    %v818 = vsub.f32 2.0, %v813
    %v819 = vsub.f32 2.0, %v814
    %v820 = vmul.f32 %v805, %v815
    %v821 = vmul.f32 %v806, %v816
    %v822 = vmul.f32 %v807, %v817
    %v823 = vmul.f32 %v808, %v818
    %v824 = vmul.f32 %v809, %v819
    %830 = vrot.lane.b32.xlu0 %v820, 6
    %v831 = vpop.permute.xlu0 %830
    %832 = vrot.lane.b32.xlu0 %v821, 6
    %v833 = vpop.permute.xlu0 %832
    %834 = vrot.lane.b32.xlu0 %v822, 6
    %v835 = vpop.permute.xlu0 %834
    %836 = vrot.lane.b32.xlu0 %v823, 6
    %v837 = vpop.permute.xlu0 %836
    %838 = vrot.lane.b32.xlu0 %v824, 6
    %v839 = vpop.permute.xlu0 %838
    %vm840 = vcmask 48128
    %v841 = vsel %vm840, %v831, %v833
    %v842 = vsel %vm840, %v833, %v835
    %v843 = vsel %vm840, %v835, %v837
    %v844 = vsel %vm840, %v837, %v839
    %v849 = vmul.f32 %v424, %v841
    %v850 = vmul.f32 %v425, %v842
    %v851 = vmul.f32 %v426, %v843
    %v852 = vmul.f32 %v427, %v844
    %853 = vst [vmem:[#allocation6] sm:$0xff] %v849
    %854 = vst [vmem:[#allocation6 + $0x8] sm:$0xff] %v850
    %855 = vst [vmem:[#allocation6 + $0x10] sm:$0xff] %v851
    %856 = vst [vmem:[#allocation6 + $0x18] sm:$0xff] %v852
    // Predicated region
    $region10: #{tpu_custom_call.1} parent=1 // pred_check
      _
    $region11: #{tpu_custom_call.1} parent=1 // pred_check_branch
      %858 = sbr.rel (0) target = $region13
    $region12: #{tpu_custom_call.1} parent=1 // pred_region
      %s860 = ssub.s32 512, 512
      %861 = vsyncadd [#allocation5], %s860
      %s863 = sshll.u32 [#allocation6], 4
      %s864 = int_to_ptr.vmem [resolvable:$true] %s863
      %866 = dma.vmem_to_hbm [thread:$0]  %s864, 512, %s1, [#allocation5]
    $region13: #{tpu_custom_call.1} parent=1 // pred_fallthru
      _
    // Predicated region
    $region14: #{tpu_custom_call.1} parent=1 // pred_check
      _
    $region15: #{tpu_custom_call.1} parent=1 // pred_check_branch
      %868 = sbr.rel (0) target = $region17
    $region16: #{tpu_custom_call.1} parent=1 // pred_region
      %869 = dma.done [#allocation5], 512
    $region17: #{tpu_custom_call.1} parent=1 // pred_fallthru
      _
    %870 = vsyncpa [#allocation4], 1
    %871 = vsyncpa [#allocation5], 1

</llo_original>
